<compile_context>
chip_gen: v6e
topology: v6e:2x2x1
jax: 0.10.0
libtpu: 0.0.40
codegen_flags: <defaults>
</compile_context>

<pallas_src>
import functools

import jax
import jax.numpy as jnp
from jax.experimental import pallas as pl
from jax.experimental.pallas import tpu as pltpu


_LANE = 128
_MIN_BLOCK_BYTES = 512 * 1024  # floor so v7x's two cores each get real work


def _chip_generation() -> str:
    try:
        kind = jax.devices()[0].device_kind.lower()
    except Exception:
        return "unknown"
    if "v7" in kind or "7x" in kind:
        return "v7x"
    if "v6" in kind:
        return "v6e"
    if "v5" in kind:
        return "v5e"
    return "unknown"


# (target block bytes, vmem_limit_bytes) per generation.
_GEN_CONFIG = {
    "v7x": (8 * 1024 * 1024, 48 << 20),   # 8 MiB x 2 arrays x 2 bufs = 32 MiB < 64 MiB phys
    "v6e": (4 * 1024 * 1024, 32 << 20),   # 16 MiB total, inside 32 MiB scoped default
    "v5e": (2 * 1024 * 1024, 16 << 20),   # 8 MiB total, inside 16 MiB scoped default
    "unknown": (2 * 1024 * 1024, 16 << 20),
}


def _leaky_relu_kernel(x_ref, o_ref, *, negative_slope):
    x = x_ref[...]
    neg = jnp.asarray(negative_slope, dtype=x.dtype)
    o_ref[...] = jnp.where(x >= 0, x, x * neg)


def _sublane_multiple(dtype) -> int:
    # Sub-32-bit dtypes pack along sublanes: keep tiles aligned to the packed tile.
    itemsize = jnp.dtype(dtype).itemsize
    return {4: 8, 2: 16, 1: 32}.get(itemsize, 8)


def leaky_relu(x: jax.Array, negative_slope: float = 0.01,
               inplace: bool = False) -> jax.Array:
    """LeakyReLU: where(x >= 0, x, x * negative_slope). Any shape, float dtype."""
    orig_shape = x.shape
    orig_dtype = x.dtype
    if not jnp.issubdtype(orig_dtype, jnp.floating):
        raise TypeError(f"leaky_relu requires a floating dtype, got {orig_dtype}")
    n = x.size
    if n == 0:
        return x

    itemsize = jnp.dtype(orig_dtype).itemsize
    sublane = _sublane_multiple(orig_dtype)
    neg = jnp.asarray(negative_slope, dtype=orig_dtype)

    x_flat = x.reshape(-1)
    main_n = n - (n % _LANE)

    if main_n == 0:
        # Tiny (<128 elem) input: not worth a kernel launch.
        out_flat = jnp.where(x_flat >= 0, x_flat, x_flat * neg)
        return out_flat.reshape(orig_shape)

    x_main = x_flat[:main_n]
    rows = main_n // _LANE
    x2d = x_main.reshape(rows, _LANE)

    gen = _chip_generation()
    target_block_bytes, vmem_limit = _GEN_CONFIG[gen]
    bytes_per_row = _LANE * itemsize

    if rows <= sublane:
        tile_rows = rows           # single full-array block (always legal)
    else:
        target_rows = max(sublane, (target_block_bytes // bytes_per_row) // sublane * sublane)
        min_rows = max(sublane, (_MIN_BLOCK_BYTES // bytes_per_row) // sublane * sublane)
        # Prefer >= 4 blocks (>= 2 per v7x TensorCore, enough steps to fill the
        # double-buffer pipeline) as long as each block stays >= ~512 KiB.
        quarter_rows = pl.cdiv(pl.cdiv(rows, 4), sublane) * sublane
        tile_rows = min(target_rows, max(quarter_rows, min_rows))
        if tile_rows >= rows:
            tile_rows = rows       # whole array in one block
    grid = (pl.cdiv(rows, tile_rows),)

    kernel = functools.partial(_leaky_relu_kernel, negative_slope=negative_slope)

    out2d = pl.pallas_call(
        kernel,
        out_shape=jax.ShapeDtypeStruct((rows, _LANE), orig_dtype),
        grid=grid,
        in_specs=[pl.BlockSpec((tile_rows, _LANE), lambda i: (i, 0))],
        out_specs=pl.BlockSpec((tile_rows, _LANE), lambda i: (i, 0)),
        compiler_params=pltpu.CompilerParams(
            dimension_semantics=("parallel",),
            vmem_limit_bytes=vmem_limit,
        ),
        cost_estimate=pl.CostEstimate(
            flops=2 * main_n,            # compare + multiply
            transcendentals=0,
            bytes_accessed=2 * main_n * itemsize,
        ),
        input_output_aliases=({0: 0} if inplace else {}),
    )(x2d)

    out_main = out2d.reshape(-1)
    if main_n == n:
        out_flat = out_main
    else:
        # Ragged <128-element tail handled outside the kernel — avoids the full
        # extra HBM pad/slice passes over the whole tensor.
        tail = x_flat[main_n:]
        tail_out = jnp.where(tail >= 0, tail, tail * neg)
        out_flat = jnp.concatenate([out_main, tail_out])
    return out_flat.reshape(orig_shape)


if __name__ == "__main__":
    key = jax.random.PRNGKey(0)
    # NCHW input, matching typical conv-encoder activations.
    x = jax.random.normal(key, (2, 4, 16, 16), dtype=jnp.float32)

    negative_slope = 0.01
    y = leaky_relu(x, negative_slope=negative_slope)
    y = jax.block_until_ready(y)

    # Reference check (plain JAX, same semantics as torch.where(x >= 0, x, x*slope)).
    y_ref = jnp.where(x >= 0.0, x, x * negative_slope)
    assert y.shape == x.shape and y.dtype == x.dtype
    assert jnp.allclose(y, y_ref, atol=0.0, rtol=0.0)

    print("KERNEL_OK")
</pallas_src>

<mosaic_0001>
module attributes {stable_mosaic.version = 11 : i64} {
  func.func @_leaky_relu_kernel(%arg0: i32, %arg1: memref<16x128xf32, #tpu.memory_space<vmem>>, %arg2: memref<16x128xf32, #tpu.memory_space<vmem>>) attributes {dimension_semantics = [#tpu.dimension_semantics<parallel>], iteration_bounds = array<i64: 1>, scalar_prefetch = 0 : i64, scratch_operands = 0 : i64, tpu.core_type = #tpu.core_type<tc>, window_params = [{transform_indices = @transform_0, window_bounds = array<i64: 16, 128>}, {transform_indices = @transform_1, window_bounds = array<i64: 16, 128>}]} {
    %c0 = arith.constant 0 : index
    %c0_0 = arith.constant 0 : index
    %0 = vector.load %arg1[%c0, %c0_0] : memref<16x128xf32, #tpu.memory_space<vmem>>, vector<16x128xf32>
    %cst = arith.constant 0.000000e+00 : f32
    %1 = vector.broadcast %cst : f32 to vector<16x128xf32>
    %2 = arith.cmpf oge, %0, %1 : vector<16x128xf32>
    %cst_1 = arith.constant 0.00999999977 : f32
    %3 = vector.broadcast %cst_1 : f32 to vector<16x128xf32>
    %4 = arith.mulf %0, %3 : vector<16x128xf32>
    %5 = arith.select %2, %0, %4 : vector<16x128xi1>, vector<16x128xf32>
    %c0_2 = arith.constant 0 : index
    %c0_3 = arith.constant 0 : index
    %6 = vector.load %arg2[%c0_2, %c0_3] : memref<16x128xf32, #tpu.memory_space<vmem>>, vector<16x128xf32>
    tpu.vector_store %arg2[%c0_2, %c0_3], %5 {strides = array<i32>} : memref<16x128xf32, #tpu.memory_space<vmem>>, vector<16x128xf32>,
    return
  }
  func.func @transform_0(%arg0: i32) -> (i32, i32) {
    %c0_i32 = arith.constant 0 : i32
    %c0_i32_0 = arith.constant 0 : i32
    return %arg0, %c0_i32 : i32, i32
  }
  func.func @transform_1(%arg0: i32) -> (i32, i32) {
    %c0_i32 = arith.constant 0 : i32
    %c0_i32_0 = arith.constant 0 : i32
    return %arg0, %c0_i32 : i32, i32
  }
}

</mosaic_0001>

<llo_original>
// kernel: tpu_custom_call.1
$region0: #{tpu_custom_call.1}
  #allocation0 [shape = 'u32[]', space=smem, size = 0x4, offset = 0x4, fixed_abs, tag = 'smem constant byte address 0x4 - core index']
  #allocation1 [shape = 'u32[144,128]{1,0:T(1,128)}', space=vmem, size = 0x12000, scoped, tag = 'internal scratch']
  %s0 = inlined_call_operand.hbm [shape: f32[16,128], index: 0, kind: input, shape index: {}]
  %s1 = inlined_call_operand.hbm [shape: f32[16,128], index: 1, kind: output, shape index: {}]
  %s2 = sld [smem:[#allocation0]]
  $region18: #{tpu_custom_call.1} parent=0
    _
  %s4 = ssub.s32 1, %s2
  %s5 = scalar_select 0, %s4, %s2
  $region1: #{tpu_custom_call.1} parent=0
    #allocation2 [shape = 'u8[8192]{0}', space=vmem, size = 0x2000, scoped, tag = 'input window, operand 0, single buffered']
    #allocation3 [shape = 's32[1]{0}', space=sflag, size = 0x4, scoped, tag = 'scoped memory for tpu_custom_call.1']
    #allocation4 [shape = 's32[1]{0}', space=sflag, size = 0x4, scoped, tag = 'scoped memory for tpu_custom_call.1']
    #allocation5 [shape = 'u8[8192]{0}', space=vmem, size = 0x2000, scoped, tag = 'output window, operand 0, single buffered']
    %6 = vsyncpa [#allocation3], 0
    %7 = vsyncpa [#allocation4], 0
    // Predicated region
    $region2: #{tpu_custom_call.1} parent=1 // pred_check
      _
    $region3: #{tpu_custom_call.1} parent=1 // pred_check_branch
      %9 = sbr.rel (0) target = $region5
    $region4: #{tpu_custom_call.1} parent=1 // pred_region
      %s11 = ssub.s32 256, 256
      %12 = vsyncadd [#allocation3], %s11
      %s13 = sshll.u32 [#allocation2], 4
      %s14 = int_to_ptr.vmem [resolvable:$true] %s13
      %19 = dma.hbm_to_vmem [thread:$0]  %s0, 256, %s14, [#allocation3], 128, 128, 8
    $region5: #{tpu_custom_call.1} parent=1 // pred_fallthru
      _
    // Predicated region
    $region6: #{tpu_custom_call.1} parent=1 // pred_check
      _
    $region7: #{tpu_custom_call.1} parent=1 // pred_check_branch
      %21 = sbr.rel (0) target = $region9
    $region8: #{tpu_custom_call.1} parent=1 // pred_region
      %22 = dma.done [#allocation3], 256
    $region9: #{tpu_custom_call.1} parent=1 // pred_fallthru
      _
    %v23 = vld [vmem:[#allocation2] sm:$0xff]
    %v24 = vld [vmem:[#allocation2 + $0x8] sm:$0xff]
    %vm25 = vcmp.ge.f32.partialorder %v23, 0.0
    %vm26 = vcmp.ge.f32.partialorder %v24, 0.0
    %v27 = vmul.f32 %v23, 0.01
    %v28 = vmul.f32 %v24, 0.01
    %v29 = vsel %vm25, %v23, %v27
    %v30 = vsel %vm26, %v24, %v28
    %31 = vst [vmem:[#allocation5] sm:$0xff] %v29
    %32 = vst [vmem:[#allocation5 + $0x8] sm:$0xff] %v30
    // Predicated region
    $region10: #{tpu_custom_call.1} parent=1 // pred_check
      _
    $region11: #{tpu_custom_call.1} parent=1 // pred_check_branch
      %34 = sbr.rel (0) target = $region13
    $region12: #{tpu_custom_call.1} parent=1 // pred_region
      %s36 = ssub.s32 256, 256
      %37 = vsyncadd [#allocation4], %s36
      %s38 = sshll.u32 [#allocation5], 4
      %s39 = int_to_ptr.vmem [resolvable:$true] %s38
      %44 = dma.vmem_to_hbm [thread:$0]  %s39, 256, %s1, [#allocation4], 128, 128, 8
    $region13: #{tpu_custom_call.1} parent=1 // pred_fallthru
      _
    // Predicated region
    $region14: #{tpu_custom_call.1} parent=1 // pred_check
      _
    $region15: #{tpu_custom_call.1} parent=1 // pred_check_branch
      %46 = sbr.rel (0) target = $region17
    $region16: #{tpu_custom_call.1} parent=1 // pred_region
      %47 = dma.done [#allocation4], 256
    $region17: #{tpu_custom_call.1} parent=1 // pred_fallthru
      _
    %48 = vsyncpa [#allocation3], 1
    %49 = vsyncpa [#allocation4], 1

</llo_original>
